<compile_context>
chip_gen: v7x
topology: tpu7x:2x2x1
jax: 0.10.0
libtpu: 0.0.40
codegen_flags: <defaults>
</compile_context>

<pallas_src>
import math
import jax
import jax.numpy as jnp
from jax.experimental import pallas as pl
from jax.experimental.pallas import tpu as pltpu


def _round_up(x, m):
    return ((x + m - 1) // m) * m


# --------------------------------------------------------------------------------
# Kernels
# --------------------------------------------------------------------------------
def linear_relu_fused_kernel(x_ref, w_ref, b_ref, o_ref):
    """Single-pass: full K resident in VMEM, one MXU call, epilogue fused."""
    acc = jnp.dot(x_ref[...].astype(jnp.bfloat16), w_ref[...],
                  preferred_element_type=jnp.float32)
    o_ref[...] = jnp.maximum(acc + b_ref[...], 0.0).astype(o_ref.dtype)


def linear_relu_ksplit_kernel(x_ref, w_ref, b_ref, o_ref, acc_ref):
    """K-split fallback for large n_in: f32 accumulator resident across K steps."""
    k = pl.program_id(2)

    @pl.when(k == 0)
    def _init():
        # Seed the accumulator with the (broadcast) bias so the epilogue is only
        # ReLU + cast.
        acc_ref[...] = jnp.broadcast_to(b_ref[...], acc_ref.shape).astype(jnp.float32)

    acc_ref[...] += jnp.dot(x_ref[...].astype(jnp.bfloat16), w_ref[...],
                            preferred_element_type=jnp.float32)

    @pl.when(k == pl.num_programs(2) - 1)
    def _finalize():
        o_ref[...] = jnp.maximum(acc_ref[...], 0.0).astype(o_ref.dtype)


# --------------------------------------------------------------------------------
# Parameter prep (done ONCE, off the per-call path)
# --------------------------------------------------------------------------------
def _choose_tn(n_out):
    np128 = _round_up(n_out, 128)
    if np128 <= 256:
        return np128  # single lane-dense tile, no extra padding
    # Prefer tiles that divide the 128-padded width exactly (no extra W padding),
    # are >=256 where possible (v6e/v7x MXU is 256-wide) and give >=2 N tiles so
    # v7x's two TensorCores both get work on the "parallel" N axis.
    for t in (512, 384, 256, 128):
        if t <= np128 // 2 and np128 % t == 0:
            return t
    return np128 if np128 <= 1024 else 512


def prepare_params(w, b, *, max_batch=512, vmem_budget_bytes=40 * 1024 * 1024,
                   max_k_tile=None):
    """Pad + cast weights once; pick tile sizes. w: (n_in, n_out) f32, b: (n_out,)."""
    n_in, n_out = w.shape

    tn = _choose_tn(n_out)
    Np = _round_up(n_out, tn)

    # K tiling: prefer full (padded) K resident in VMEM -> no reduction grid axis.
    Kp_full = _round_up(n_in, 128)
    tm_max = min(_round_up(max_batch, 8), 512)
    est_full = (2 * tm_max * Kp_full * 4      # x panels, f32, double-buffered
                + 2 * Kp_full * tn * 2        # w panels, bf16, double-buffered
                + 2 * tn * 4                  # bias
                + 2 * tm_max * tn * 4)        # output tiles
    if max_k_tile is None and est_full <= vmem_budget_bytes:
        tk = Kp_full
        Kp = Kp_full
    else:
        tk = min(max_k_tile if max_k_tile is not None else 512, 512)
        tk = _round_up(tk, 256) if tk >= 256 else _round_up(tk, 128)
        Kp = _round_up(n_in, tk)

    wp = jnp.pad(w, ((0, Kp - n_in), (0, Np - n_out))).astype(jnp.bfloat16)
    bp = jnp.pad(b, (0, Np - n_out)).astype(jnp.float32).reshape(1, Np)
    return {"w": wp, "b": bp, "n_in": n_in, "n_out": n_out,
            "Kp": Kp, "Np": Np, "tn": tn, "tk": tk}


# --------------------------------------------------------------------------------
# Forward
# --------------------------------------------------------------------------------
def block_forward(x, params):
    """Pallas equivalent of `block.forward`: ReLU(x @ w + b)."""
    B, n_in = x.shape
    assert n_in == params["n_in"], "input feature mismatch"
    Kp, Np, tn, tk = params["Kp"], params["Np"], params["tn"], params["tk"]
    n_out = params["n_out"]

    # One M tile for realistic batches -> W streamed from HBM exactly once.
    tm = min(_round_up(B, 8), 512)
    Bp = _round_up(B, tm)

    xp = x if (Bp, Kp) == (B, n_in) else jnp.pad(x, ((0, Bp - B), (0, Kp - n_in)))

    m_tiles, n_tiles, k_tiles = Bp // tm, Np // tn, Kp // tk
    cparams = pltpu.CompilerParams(
        dimension_semantics=(("parallel", "parallel") if k_tiles == 1
                             else ("parallel", "parallel", "arbitrary")),
        vmem_limit_bytes=48 * 1024 * 1024,  # fits v7x's 64 MiB physical VMEM
    )

    if k_tiles == 1:
        out = pl.pallas_call(
            linear_relu_fused_kernel,
            out_shape=jax.ShapeDtypeStruct((Bp, Np), x.dtype),
            grid_spec=pltpu.PrefetchScalarGridSpec(
                num_scalar_prefetch=0,
                grid=(m_tiles, n_tiles),
                in_specs=[
                    pl.BlockSpec((tm, Kp), lambda i, j: (i, 0)),   # x panel (full K)
                    pl.BlockSpec((Kp, tn), lambda i, j: (0, j)),   # w panel (bf16)
                    pl.BlockSpec((1, tn), lambda i, j: (0, j)),    # bias
                ],
                out_specs=pl.BlockSpec((tm, tn), lambda i, j: (i, j)),
            ),
            compiler_params=cparams,
        )(xp, params["w"], params["b"])
    else:
        out = pl.pallas_call(
            linear_relu_ksplit_kernel,
            out_shape=jax.ShapeDtypeStruct((Bp, Np), x.dtype),
            grid_spec=pltpu.PrefetchScalarGridSpec(
                num_scalar_prefetch=0,
                grid=(m_tiles, n_tiles, k_tiles),
                in_specs=[
                    pl.BlockSpec((tm, tk), lambda i, j, k: (i, k)),   # x tile
                    pl.BlockSpec((tk, tn), lambda i, j, k: (k, j)),   # w tile (bf16)
                    pl.BlockSpec((1, tn), lambda i, j, k: (0, j)),    # bias
                ],
                # Output tile constant across K -> accumulator resident over the
                # reduction; written once in the finalize block.
                out_specs=pl.BlockSpec((tm, tn), lambda i, j, k: (i, j)),
                scratch_shapes=[pltpu.VMEM((tm, tn), jnp.float32)],
            ),
            compiler_params=cparams,
        )(xp, params["w"], params["b"])

    if (Bp, Np) != (B, n_out):
        out = out[:B, :n_out]
    return out


# --------------------------------------------------------------------------------
# Init matching the PyTorch Xavier() helper
# --------------------------------------------------------------------------------
def xavier_init(key, n_in, n_out):
    # std = sqrt(2/(fan_in+fan_out)), a = sqrt(3)*std, U(-a, a); bias = 0.
    std = 1.0 * math.sqrt(2.0 / (n_in + n_out))
    a = math.sqrt(3.0) * std
    w = jax.random.uniform(key, (n_in, n_out), jnp.float32, minval=-a, maxval=a)
    b = jnp.zeros((n_out,), jnp.float32)
    return w, b


def _reference(x, w, b):
    # Reference matching the kernel's bf16-input / f32-accumulate numerics.
    xr = x.astype(jnp.bfloat16).astype(jnp.float32)
    wr = w.astype(jnp.bfloat16).astype(jnp.float32)
    return jnp.maximum(
        jnp.matmul(xr, wr, precision=jax.lax.Precision.HIGHEST) + b[None, :], 0.0)


if __name__ == "__main__":
    key = jax.random.PRNGKey(0)
    k_x, k_w, k_x2, k_w2 = jax.random.split(key, 4)

    # 1) Small shapes matching the original toy module: single-pass fused kernel,
    #    grid collapses to (1, 1), full K resident in VMEM.
    batch, n_in, n_out = 8, 32, 32
    x = jax.random.normal(k_x, (batch, n_in), jnp.float32)
    w, b = xavier_init(k_w, n_in, n_out)
    params = prepare_params(w, b, max_batch=batch)

    out = block_forward(x, params)
    jax.block_until_ready(out)
    ref = _reference(x, w, b)
    assert out.shape == (batch, n_out)
    assert jnp.allclose(out, ref, atol=2e-3, rtol=2e-3)

    # 2) Larger shapes with a forced K split: exercises the (M, N, K) grid, the
    #    bias-seeded accumulator and the pl.when finalize path (grid = (1, 3, 3)).
    batch2, n_in2, n_out2 = 200, 640, 384
    x2 = jax.random.normal(k_x2, (batch2, n_in2), jnp.float32)
    w2, b2 = xavier_init(k_w2, n_in2, n_out2)
    params2 = prepare_params(w2, b2, max_batch=batch2, max_k_tile=256)

    out2 = block_forward(x2, params2)
    jax.block_until_ready(out2)
    ref2 = _reference(x2, w2, b2)
    assert out2.shape == (batch2, n_out2)
    assert jnp.allclose(out2, ref2, atol=5e-3, rtol=5e-3)

    # 3) Same shapes through the auto-selected full-K single-pass path.
    params3 = prepare_params(w2, b2, max_batch=batch2)
    out3 = block_forward(x2, params3)
    jax.block_until_ready(out3)
    assert jnp.allclose(out3, ref2, atol=5e-3, rtol=5e-3)

    print("KERNEL_OK")
</pallas_src>

<mosaic_0001>
module attributes {stable_mosaic.version = 11 : i64} {
  func.func @linear_relu_fused_kernel(%arg0: i32, %arg1: i32, %arg2: memref<8x128xf32, #tpu.memory_space<vmem>>, %arg3: memref<128x128xbf16, #tpu.memory_space<vmem>>, %arg4: memref<1x128xf32, #tpu.memory_space<vmem>>, %arg5: memref<8x128xf32, #tpu.memory_space<vmem>>) attributes {dimension_semantics = [#tpu.dimension_semantics<parallel>, #tpu.dimension_semantics<parallel>], iteration_bounds = array<i64: 1, 1>, scalar_prefetch = 0 : i64, scratch_operands = 0 : i64, tpu.core_type = #tpu.core_type<tc>, window_params = [{transform_indices = @transform_0, window_bounds = array<i64: 8, 128>}, {transform_indices = @transform_1, window_bounds = array<i64: 128, 128>}, {transform_indices = @transform_2, window_bounds = array<i64: 1, 128>}, {transform_indices = @transform_3, window_bounds = array<i64: 8, 128>}]} {
    %c0 = arith.constant 0 : index
    %c0_0 = arith.constant 0 : index
    %0 = vector.load %arg2[%c0, %c0_0] : memref<8x128xf32, #tpu.memory_space<vmem>>, vector<8x128xf32>
    %1 = arith.truncf %0 : vector<8x128xf32> to vector<8x128xbf16>
    %c0_1 = arith.constant 0 : index
    %c0_2 = arith.constant 0 : index
    %2 = vector.load %arg3[%c0_1, %c0_2] : memref<128x128xbf16, #tpu.memory_space<vmem>>, vector<128x128xbf16>
    %cst = arith.constant dense<0.000000e+00> : vector<8x128xf32>
    %3 = tpu.matmul %1, %2, %cst {dimension_numbers = #tpu.dot_dimension_numbers<[1], [0], [0], [1], [0, 0, 1, 1], [], []>} : vector<8x128xbf16>, vector<128x128xbf16>, vector<8x128xf32> -> vector<8x128xf32>
    %c0_3 = arith.constant 0 : index
    %c0_4 = arith.constant 0 : index
    %4 = vector.load %arg4[%c0_3, %c0_4] : memref<1x128xf32, #tpu.memory_space<vmem>>, vector<1x128xf32>
    %5 = vector.broadcast %4 : vector<1x128xf32> to vector<8x128xf32>
    %6 = arith.addf %3, %5 : vector<8x128xf32>
    %cst_5 = arith.constant 0.000000e+00 : f32
    %7 = vector.broadcast %cst_5 : f32 to vector<8x128xf32>
    %8 = arith.maximumf %6, %7 : vector<8x128xf32>
    %c0_6 = arith.constant 0 : index
    %c0_7 = arith.constant 0 : index
    %9 = vector.load %arg5[%c0_6, %c0_7] : memref<8x128xf32, #tpu.memory_space<vmem>>, vector<8x128xf32>
    tpu.vector_store %arg5[%c0_6, %c0_7], %8 {strides = array<i32>} : memref<8x128xf32, #tpu.memory_space<vmem>>, vector<8x128xf32>,
    return
  }
  func.func @transform_0(%arg0: i32, %arg1: i32) -> (i32, i32) {
    %c0_i32 = arith.constant 0 : i32
    %c0_i32_0 = arith.constant 0 : i32
    return %arg0, %c0_i32 : i32, i32
  }
  func.func @transform_1(%arg0: i32, %arg1: i32) -> (i32, i32) {
    %c0_i32 = arith.constant 0 : i32
    %c0_i32_0 = arith.constant 0 : i32
    return %c0_i32, %arg1 : i32, i32
  }
  func.func @transform_2(%arg0: i32, %arg1: i32) -> (i32, i32) {
    %c0_i32 = arith.constant 0 : i32
    %c0_i32_0 = arith.constant 0 : i32
    return %c0_i32, %arg1 : i32, i32
  }
  func.func @transform_3(%arg0: i32, %arg1: i32) -> (i32, i32) {
    %c0_i32 = arith.constant 0 : i32
    return %arg0, %arg1 : i32, i32
  }
}

</mosaic_0001>

<llo_original>
// kernel: tpu_custom_call.1
$region0: #{tpu_custom_call.1}
  #allocation0 [shape = 'u32[]', space=smem, size = 0x4, offset = 0x4, fixed_abs, tag = 'smem constant byte address 0x4 - core index']
  #allocation1 [shape = 'u32[144,128]{1,0:T(1,128)}', space=vmem, size = 0x12000, scoped, tag = 'internal scratch']
  %s0 = inlined_call_operand.hbm [shape: f32[8,128], index: 0, kind: input, shape index: {}]
  %s1 = inlined_call_operand.hbm [shape: bf16[128,128], index: 1, kind: input, shape index: {}]
  %s2 = inlined_call_operand.vmem [shape: f32[1,128], index: 2, kind: input, shape index: {}]
  %s3 = inlined_call_operand.hbm [shape: f32[8,128], index: 3, kind: output, shape index: {}]
  %s4 = sld [smem:[#allocation0]]
  $region30: #{tpu_custom_call.1} parent=0
    _
  %s6 = ssub.s32 1, %s4
  %s7 = scalar_select 0, %s6, %s4
  $region1: #{tpu_custom_call.1} parent=0
    #allocation2 [shape = 'u8[4096]{0}', space=vmem, size = 0x1000, scoped, tag = 'input window, operand 0, single buffered']
    #allocation3 [shape = 's32[1]{0}', space=sflag, size = 0x4, scoped, tag = 'scoped memory for tpu_custom_call.1']
    #allocation4 [shape = 's32[1]{0}', space=sflag, size = 0x4, scoped, tag = 'scoped memory for tpu_custom_call.1']
    #allocation5 [shape = 'u8[32768]{0}', space=vmem, size = 0x8000, scoped, tag = 'input window, operand 1, single buffered']
    #allocation6 [shape = 's32[1]{0}', space=sflag, size = 0x4, scoped, tag = 'scoped memory for tpu_custom_call.1']
    #allocation7 [shape = 'u8[4096]{0}', space=vmem, size = 0x1000, scoped, tag = 'output window, operand 0, single buffered']
    %8 = vsyncpa [#allocation3], 0
    %9 = vsyncpa [#allocation6], 0
    %10 = vsyncpa [#allocation4], 0
    // Predicated region
    $region2: #{tpu_custom_call.1} parent=1 // pred_check
      _
    $region3: #{tpu_custom_call.1} parent=1 // pred_check_branch
      %12 = sbr.rel (0) target = $region5
    $region4: #{tpu_custom_call.1} parent=1 // pred_region
      %s14 = ssub.s32 128, 128
      %15 = vsyncadd [#allocation3], %s14
      %s17 = sshll.u32 [#allocation2], 4
      %s18 = int_to_ptr.vmem [resolvable:$true] %s17
      %20 = dma.hbm_to_vmem [thread:$0]  %s0, 128, %s18, [#allocation3]
    $region5: #{tpu_custom_call.1} parent=1 // pred_fallthru
      _
    // Predicated region
    $region6: #{tpu_custom_call.1} parent=1 // pred_check
      _
    $region7: #{tpu_custom_call.1} parent=1 // pred_check_branch
      %22 = sbr.rel (0) target = $region9
    $region8: #{tpu_custom_call.1} parent=1 // pred_region
      %s24 = ssub.s32 1024, 1024
      %25 = vsyncadd [#allocation6], %s24
      %s26 = sshll.u32 [#allocation5], 4
      %s27 = int_to_ptr.vmem [resolvable:$true] %s26
      %32 = dma.hbm_to_vmem [thread:$0]  %s1, 1024, %s27, [#allocation6], 64, 64, 4
    $region9: #{tpu_custom_call.1} parent=1 // pred_fallthru
      _
    // Predicated region
    $region10: #{tpu_custom_call.1} parent=1 // pred_check
      _
    $region11: #{tpu_custom_call.1} parent=1 // pred_check_branch
      %34 = sbr.rel (0) target = $region13
    $region12: #{tpu_custom_call.1} parent=1 // pred_region
      _
    $region13: #{tpu_custom_call.1} parent=1 // pred_fallthru
      _
    // Predicated region
    $region14: #{tpu_custom_call.1} parent=1 // pred_check
      _
    $region15: #{tpu_custom_call.1} parent=1 // pred_check_branch
      %36 = sbr.rel (0) target = $region17
    $region16: #{tpu_custom_call.1} parent=1 // pred_region
      %37 = dma.done [#allocation3], 128
    $region17: #{tpu_custom_call.1} parent=1 // pred_fallthru
      _
    // Predicated region
    $region18: #{tpu_custom_call.1} parent=1 // pred_check
      _
    $region19: #{tpu_custom_call.1} parent=1 // pred_check_branch
      %39 = sbr.rel (0) target = $region21
    $region20: #{tpu_custom_call.1} parent=1 // pred_region
      %40 = dma.done [#allocation6], 1024
    $region21: #{tpu_custom_call.1} parent=1 // pred_fallthru
      _
    %v42 = vld [vmem:[#allocation2] sm:$0xff]
    %v43 = vpack.c.bf16 %v42, %v42
    %v44 = vld [vmem:[#allocation5] sm:$0xf]
    %v45 = vld [vmem:[#allocation5 + $0x4] sm:$0xf]
    %v46 = vld [vmem:[#allocation5 + $0x8] sm:$0xf]
    %v47 = vld [vmem:[#allocation5 + $0xc] sm:$0xf]
    %v48 = vld [vmem:[#allocation5 + $0x10] sm:$0xf]
    %v49 = vld [vmem:[#allocation5 + $0x14] sm:$0xf]
    %v50 = vld [vmem:[#allocation5 + $0x18] sm:$0xf]
    %v51 = vld [vmem:[#allocation5 + $0x1c] sm:$0xf]
    %v52 = vld [vmem:[#allocation5 + $0x20] sm:$0xf]
    %v53 = vld [vmem:[#allocation5 + $0x24] sm:$0xf]
    %v54 = vld [vmem:[#allocation5 + $0x28] sm:$0xf]
    %v55 = vld [vmem:[#allocation5 + $0x2c] sm:$0xf]
    %v56 = vld [vmem:[#allocation5 + $0x30] sm:$0xf]
    %v57 = vld [vmem:[#allocation5 + $0x34] sm:$0xf]
    %v58 = vld [vmem:[#allocation5 + $0x38] sm:$0xf]
    %v59 = vld [vmem:[#allocation5 + $0x3c] sm:$0xf]
    %v60 = vld [vmem:[%s2] sm:$0x1]
    %v62 = vlaneseq
    %v63 = vshrl.u32 %v62, 7
    %v64 = vsub.s32 0, %v63
    %v65 = vrot.slane %v60, %v64
    %v83 = vunpack.c.l.b16 %v44
    %v84 = vunpack.c.l.b16 %v45
    %v85 = vunpack.c.l.b16 %v46
    %v86 = vunpack.c.l.b16 %v47
    %v87 = vunpack.c.l.b16 %v48
    %v88 = vunpack.c.l.b16 %v49
    %v89 = vunpack.c.l.b16 %v50
    %v90 = vunpack.c.l.b16 %v51
    %v91 = vunpack.c.l.b16 %v52
    %v92 = vunpack.c.l.b16 %v53
    %v93 = vunpack.c.l.b16 %v54
    %v94 = vunpack.c.l.b16 %v55
    %v95 = vunpack.c.l.b16 %v56
    %v96 = vunpack.c.l.b16 %v57
    %v97 = vunpack.c.l.b16 %v58
    %v98 = vunpack.c.l.b16 %v59
    %v99 = vpack.c.b16 %v84, %v83
    %v100 = vpack.c.b16 %v86, %v85
    %v101 = vpack.c.b16 %v88, %v87
    %v102 = vpack.c.b16 %v90, %v89
    %v103 = vpack.c.b16 %v92, %v91
    %v104 = vpack.c.b16 %v94, %v93
    %v105 = vpack.c.b16 %v96, %v95
    %v106 = vpack.c.b16 %v98, %v97
    %115 = vmatprep.subr.bf16.mxu0 0
    %116 = vmatpush1.bf16.msra.mxu0 %v99
    %117 = vmatprep.subr.bf16.mxu0 0
    %118 = vmatpush1.bf16.msra.mxu0 %v100
    %119 = vmatprep.subr.bf16.mxu0 0
    %120 = vmatpush1.bf16.msra.mxu0 %v101
    %121 = vmatprep.subr.bf16.mxu0 0
    %122 = vmatpush1.bf16.msra.mxu0 %v102
    %123 = vmatprep.subr.bf16.mxu0 0
    %124 = vmatpush1.bf16.msra.mxu0 %v103
    %125 = vmatprep.subr.bf16.mxu0 0
    %126 = vmatpush1.bf16.msra.mxu0 %v104
    %127 = vmatprep.subr.bf16.mxu0 0
    %128 = vmatpush1.bf16.msra.mxu0 %v105
    %129 = vmatprep.subr.bf16.mxu0 0
    %130 = vmatpush1.bf16.msra.mxu0 %v106
    %131 = vmatprep.subr.bf16.mxu0 0
    %132 = vmatpush1.bf16.msra.mxu0 0
    %133 = vmatprep.subr.bf16.mxu0 0
    %134 = vmatpush1.bf16.msra.mxu0 0
    %135 = vmatprep.subr.bf16.mxu0 0
    %136 = vmatpush1.bf16.msra.mxu0 0
    %137 = vmatprep.subr.bf16.mxu0 0
    %138 = vmatpush1.bf16.msra.mxu0 0
    %139 = vmatprep.subr.bf16.mxu0 0
    %140 = vmatpush1.bf16.msra.mxu0 0
    %141 = vmatprep.subr.bf16.mxu0 0
    %142 = vmatpush1.bf16.msra.mxu0 0
    %143 = vmatprep.subr.bf16.mxu0 0
    %144 = vmatpush1.bf16.msra.mxu0 0
    %145 = vmatprep.subr.bf16.mxu0 0
    %146 = vmatpush1.bf16.msra.mxu0 0
    %147 = vmatprep.mubr.bf16.mxu0 0
    %148 = vmatmul.mubr.bf16.gmra.mrb[0].mxu0 %v43
    %v149 = vpop.f32.mrb[0].mxu0
    %v150 = vadd.f32 %v65, %v149
    %v151 = vpop.f32.mrb[0].mxu0
    %v152 = vpop.f32.mrb[0].mxu0
    %v153 = vpop.f32.mrb[0].mxu0
    %154 = vdwg.mxu0
    %v155 = vmax.f32 %v150, 0.0
    %156 = vst [vmem:[#allocation7] sm:$0xff] %v155
    // Predicated region
    $region22: #{tpu_custom_call.1} parent=1 // pred_check
      _
    $region23: #{tpu_custom_call.1} parent=1 // pred_check_branch
      %158 = sbr.rel (0) target = $region25
    $region24: #{tpu_custom_call.1} parent=1 // pred_region
      %s160 = ssub.s32 128, 128
      %161 = vsyncadd [#allocation4], %s160
      %s163 = sshll.u32 [#allocation7], 4
      %s164 = int_to_ptr.vmem [resolvable:$true] %s163
      %166 = dma.vmem_to_hbm [thread:$0]  %s164, 128, %s3, [#allocation4]
    $region25: #{tpu_custom_call.1} parent=1 // pred_fallthru
      _
    // Predicated region
    $region26: #{tpu_custom_call.1} parent=1 // pred_check
      _
    $region27: #{tpu_custom_call.1} parent=1 // pred_check_branch
      %168 = sbr.rel (0) target = $region29
    $region28: #{tpu_custom_call.1} parent=1 // pred_region
      %169 = dma.done [#allocation4], 128
    $region29: #{tpu_custom_call.1} parent=1 // pred_fallthru
      _
    %170 = vsyncpa [#allocation3], 1
    %171 = vsyncpa [#allocation6], 1
    %172 = vsyncpa [#allocation4], 1

</llo_original>
